<compile_context>
chip_gen: v5e
topology: v5e:2x2
jax: 0.10.0
libtpu: 0.0.40
codegen_flags: <defaults>
</compile_context>

<pallas_src>
from functools import partial

import jax
import jax.numpy as jnp
import numpy as np
from jax.experimental import pallas as pl
from jax.experimental.pallas import tpu as pltpu


def _round_up(x, m):
    return ((x + m - 1) // m) * m


def meta_actor_kernel(x_ref, wp_ref, bp_ref, w1_ref, b1_ref, w2t_ref, b2_ref,
                      out_ref, *, max_action):
    # NOTE: every op in this body is strictly per-row (no cross-row reductions or
    # normalizations).  That invariant is what makes the unpadded tail block safe:
    # garbage OOB input rows can never contaminate valid rows, and their outputs are
    # sliced away in the wrapper.  Keep it that way if this kernel is ever extended.
    x = x_ref[...]                                                  # (TM, obs_dim)

    # ---- preprocess net: Linear(obs_dim -> d) + ReLU  => "logits" rows ----
    h0 = jnp.dot(x, wp_ref[...], preferred_element_type=jnp.float32) + bp_ref[...]
    h0 = jnp.maximum(h0, 0.0)                                       # (TM, d)

    # ---- self.last = MLP(d, 1, hidden_sizes=(H,)): hidden Linear + ReLU ----
    h1 = jnp.dot(h0, w1_ref[...], preferred_element_type=jnp.float32) + b1_ref[...]
    h1 = jnp.maximum(h1, 0.0)                                       # (TM, h)

    # ---- final Linear(h -> 1), produced directly LANE-DENSE as a (1, TM) row ----
    # Contract over h with q@k^T-style dimension numbers: (1, h) x (TM, h) -> (1, TM).
    # The rows land on lanes, so the store below is a single dense row per tile
    # instead of one masked vst per 8 rows (the old (TM, 1) column layout).
    zt = jax.lax.dot_general(w2t_ref[...], h1,
                             dimension_numbers=(((1,), (1,)), ((), ())),
                             preferred_element_type=jnp.float32)    # (1, TM)
    zt = zt + b2_ref[...]

    # ---- max_action * tanh(.) (EUP) ----
    out_ref[...] = max_action * jnp.tanh(zt)


def _select_row_tile(n, tm):
    """Row-tile size.  Rows map to output lanes, so keep multiples of 128."""
    tm = _round_up(max(tm, 128), 128)
    tm_eff = min(tm, _round_up(n, 128))
    # Pipelining: once the batch is big enough, guarantee >=4 grid steps (dual-TC v7x:
    # megacore sharding + per-core double buffering) resp. >=2 steps (single-TC v5e/v6e:
    # overlap the x HBM read with compute) instead of collapsing to one mega-block.
    if n >= 2048:
        tm_eff = min(tm_eff, _round_up(pl.cdiv(n, 4), 128))
    elif n >= 1024:
        tm_eff = min(tm_eff, _round_up(pl.cdiv(n, 2), 128))
    return max(tm_eff, 128)


def meta_actor_forward(obs, params, *, max_action=1.0, tm=2048):
    """Returns (logits, hidden) exactly like MetaActor.forward (hidden=None)."""
    obs = obs.astype(jnp.float32)
    bsz, ch, obs_dim = obs.shape
    x = obs.reshape(-1, obs_dim)          # (N, obs_dim), features on lanes
    n = x.shape[0]

    wp, bp, w1, b1, w2, b2 = (params["wp"], params["bp"], params["w1"],
                              params["b1"], params["w2"], params["b2"])
    d = wp.shape[1]
    h = w1.shape[1]
    w2t = w2.reshape(1, h)                # (h, 1) -> (1, h) row for the final contraction

    tm_eff = _select_row_tile(n, tm)
    num_tiles = pl.cdiv(n, tm_eff)        # no jnp.pad: tail block handled by Pallas
    grid = (num_tiles,)

    flops = 2 * n * (obs_dim * d + d * h + h)
    bytes_accessed = 4 * (n * obs_dim + num_tiles * tm_eff              # x in, out
                          + obs_dim * d + d + d * h + h + h + 1)        # weights/biases
    cost = pl.CostEstimate(flops=flops, transcendentals=n,
                           bytes_accessed=bytes_accessed)

    out = pl.pallas_call(
        partial(meta_actor_kernel, max_action=max_action),
        out_shape=jax.ShapeDtypeStruct((num_tiles, tm_eff), jnp.float32),
        grid=grid,
        in_specs=[
            pl.BlockSpec((tm_eff, obs_dim), lambda i: (i, 0)),   # x row tile
            pl.BlockSpec((obs_dim, d), lambda i: (0, 0)),        # preprocess W (resident)
            pl.BlockSpec((1, d), lambda i: (0, 0)),              # preprocess b
            pl.BlockSpec((d, h), lambda i: (0, 0)),              # MLP hidden W
            pl.BlockSpec((1, h), lambda i: (0, 0)),              # MLP hidden b
            pl.BlockSpec((1, h), lambda i: (0, 0)),              # MLP out W (as row)
            pl.BlockSpec((1, 1), lambda i: (0, 0)),              # MLP out b
        ],
        # Lane-dense output: one (1, TM) row per grid step, dense HBM writeback.
        out_specs=pl.BlockSpec((1, tm_eff), lambda i: (i, 0)),
        compiler_params=pltpu.CompilerParams(
            dimension_semantics=("parallel",)),
        cost_estimate=cost,
    )(x, wp, bp, w1, b1, w2t, b2)

    # Un-tile: row-major (num_tiles, tm_eff) flattens to row index i*tm_eff + j.
    logits = out.reshape(-1)[:n].reshape(bsz, ch)
    hidden = None  # preprocess state is passed through unchanged (None here)
    return logits, hidden


def init_params(key, obs_dim, d, h):
    k = jax.random.split(key, 6)

    def lin(kw, kb, fan_in, fan_out):
        s = 1.0 / np.sqrt(fan_in)
        w = jax.random.uniform(kw, (fan_in, fan_out), jnp.float32, -s, s)
        b = jax.random.uniform(kb, (1, fan_out), jnp.float32, -s, s)
        return w, b

    wp, bp = lin(k[0], k[1], obs_dim, d)
    w1, b1 = lin(k[2], k[3], d, h)
    w2, b2 = lin(k[4], k[5], h, 1)
    return {"wp": wp, "bp": bp, "w1": w1, "b1": b1, "w2": w2, "b2": b2}


def _reference(obs, params, max_action):
    bsz, ch, od = obs.shape
    x = obs.reshape(-1, od).astype(jnp.float32)
    h0 = jnp.maximum(x @ params["wp"] + params["bp"], 0.0)
    h1 = jnp.maximum(h0 @ params["w1"] + params["b1"], 0.0)
    z = h1 @ params["w2"] + params["b2"]
    return (max_action * jnp.tanh(z)).reshape(bsz, ch)


if __name__ == "__main__":
    bsz, ch, obs_dim = 2, 4, 16   # preprocess "logits" would be (2, 4, 32)
    d, h = 32, 32                 # preprocess output dim, MLP hidden size
    max_action = 1.0

    key = jax.random.PRNGKey(0)
    k_obs, k_par, k_obs2, k_obs3 = jax.random.split(key, 4)
    obs = jax.random.normal(k_obs, (bsz, ch, obs_dim), jnp.float32)
    params = init_params(k_par, obs_dim, d, h)

    logits, hidden = meta_actor_forward(obs, params, max_action=max_action)
    logits = jax.block_until_ready(logits)

    ref = _reference(obs, params, max_action)
    np.testing.assert_allclose(np.asarray(logits), np.asarray(ref),
                               rtol=1e-4, atol=2e-5)
    assert logits.shape == (bsz, ch)
    assert hidden is None

    # Tail path: N = 3*7 = 21 rows -> single 128-row tile with a masked partial block.
    obs2 = jax.random.normal(k_obs2, (3, 7, obs_dim), jnp.float32)
    logits2, _ = meta_actor_forward(obs2, params, max_action=2.0, tm=128)
    logits2 = jax.block_until_ready(logits2)
    ref2 = _reference(obs2, params, 2.0)
    np.testing.assert_allclose(np.asarray(logits2), np.asarray(ref2),
                               rtol=1e-4, atol=2e-5)
    assert logits2.shape == (3, 7)

    # Multi-tile lane-dense output + unpadded tail: N = 16*33 = 528, tm=256 -> grid of 3
    # (last block partial), output (3, 256) un-tiled back to (16, 33).
    obs3 = jax.random.normal(k_obs3, (16, 33, obs_dim), jnp.float32)
    logits3, _ = meta_actor_forward(obs3, params, max_action=0.5, tm=256)
    logits3 = jax.block_until_ready(logits3)
    ref3 = _reference(obs3, params, 0.5)
    np.testing.assert_allclose(np.asarray(logits3), np.asarray(ref3),
                               rtol=1e-4, atol=2e-5)
    assert logits3.shape == (16, 33)

    print("KERNEL_OK")
</pallas_src>

<mosaic_0001>
module attributes {stable_mosaic.version = 11 : i64} {
  func.func @meta_actor_kernel(%arg0: i32, %arg1: memref<128x16xf32, #tpu.memory_space<vmem>>, %arg2: memref<16x32xf32, #tpu.memory_space<vmem>>, %arg3: memref<1x32xf32, #tpu.memory_space<vmem>>, %arg4: memref<32x32xf32, #tpu.memory_space<vmem>>, %arg5: memref<1x32xf32, #tpu.memory_space<vmem>>, %arg6: memref<1x32xf32, #tpu.memory_space<vmem>>, %arg7: memref<1x1xf32, #tpu.memory_space<vmem>>, %arg8: memref<1x128xf32, #tpu.memory_space<vmem>>) attributes {dimension_semantics = [#tpu.dimension_semantics<parallel>], iteration_bounds = array<i64: 1>, scalar_prefetch = 0 : i64, scratch_operands = 0 : i64, tpu.core_type = #tpu.core_type<tc>, window_params = [{transform_indices = @transform_0, window_bounds = array<i64: 128, 16>}, {pipeline_mode = #tpu.pipeline_mode<synchronous>, transform_indices = @transform_1, window_bounds = array<i64: 16, 32>}, {pipeline_mode = #tpu.pipeline_mode<synchronous>, transform_indices = @transform_2, window_bounds = array<i64: 1, 32>}, {pipeline_mode = #tpu.pipeline_mode<synchronous>, transform_indices = @transform_3, window_bounds = array<i64: 32, 32>}, {pipeline_mode = #tpu.pipeline_mode<synchronous>, transform_indices = @transform_4, window_bounds = array<i64: 1, 32>}, {pipeline_mode = #tpu.pipeline_mode<synchronous>, transform_indices = @transform_5, window_bounds = array<i64: 1, 32>}, {pipeline_mode = #tpu.pipeline_mode<synchronous>, transform_indices = @transform_6, window_bounds = array<i64: 1, 1>}, {transform_indices = @transform_7, window_bounds = array<i64: 1, 128>}]} {
    %c0 = arith.constant 0 : index
    %c0_0 = arith.constant 0 : index
    %0 = vector.load %arg1[%c0, %c0_0] : memref<128x16xf32, #tpu.memory_space<vmem>>, vector<128x16xf32>
    %c0_1 = arith.constant 0 : index
    %c0_2 = arith.constant 0 : index
    %1 = vector.load %arg2[%c0_1, %c0_2] : memref<16x32xf32, #tpu.memory_space<vmem>>, vector<16x32xf32>
    %cst = arith.constant dense<0.000000e+00> : vector<128x32xf32>
    %2 = tpu.matmul %0, %1, %cst {dimension_numbers = #tpu.dot_dimension_numbers<[1], [0], [0], [1], [0, 0, 1, 1], [], []>} : vector<128x16xf32>, vector<16x32xf32>, vector<128x32xf32> -> vector<128x32xf32>
    %c0_3 = arith.constant 0 : index
    %c0_4 = arith.constant 0 : index
    %3 = vector.load %arg3[%c0_3, %c0_4] : memref<1x32xf32, #tpu.memory_space<vmem>>, vector<1x32xf32>
    %4 = vector.broadcast %3 : vector<1x32xf32> to vector<128x32xf32>
    %5 = arith.addf %2, %4 : vector<128x32xf32>
    %cst_5 = arith.constant 0.000000e+00 : f32
    %6 = vector.broadcast %cst_5 : f32 to vector<128x32xf32>
    %7 = arith.maximumf %5, %6 : vector<128x32xf32>
    %c0_6 = arith.constant 0 : index
    %c0_7 = arith.constant 0 : index
    %8 = vector.load %arg4[%c0_6, %c0_7] : memref<32x32xf32, #tpu.memory_space<vmem>>, vector<32x32xf32>
    %cst_8 = arith.constant dense<0.000000e+00> : vector<128x32xf32>
    %9 = tpu.matmul %7, %8, %cst_8 {dimension_numbers = #tpu.dot_dimension_numbers<[1], [0], [0], [1], [0, 0, 1, 1], [], []>} : vector<128x32xf32>, vector<32x32xf32>, vector<128x32xf32> -> vector<128x32xf32>
    %c0_9 = arith.constant 0 : index
    %c0_10 = arith.constant 0 : index
    %10 = vector.load %arg5[%c0_9, %c0_10] : memref<1x32xf32, #tpu.memory_space<vmem>>, vector<1x32xf32>
    %11 = vector.broadcast %10 : vector<1x32xf32> to vector<128x32xf32>
    %12 = arith.addf %9, %11 : vector<128x32xf32>
    %cst_11 = arith.constant 0.000000e+00 : f32
    %13 = vector.broadcast %cst_11 : f32 to vector<128x32xf32>
    %14 = arith.maximumf %12, %13 : vector<128x32xf32>
    %c0_12 = arith.constant 0 : index
    %c0_13 = arith.constant 0 : index
    %15 = vector.load %arg6[%c0_12, %c0_13] : memref<1x32xf32, #tpu.memory_space<vmem>>, vector<1x32xf32>
    %cst_14 = arith.constant dense<0.000000e+00> : vector<1x128xf32>
    %16 = tpu.matmul %15, %14, %cst_14 {dimension_numbers = #tpu.dot_dimension_numbers<[1], [1], [0], [0], [0, 0, 1, 0], [], []>} : vector<1x32xf32>, vector<128x32xf32>, vector<1x128xf32> -> vector<1x128xf32>
    %c0_15 = arith.constant 0 : index
    %c0_16 = arith.constant 0 : index
    %17 = vector.load %arg7[%c0_15, %c0_16] : memref<1x1xf32, #tpu.memory_space<vmem>>, vector<1x1xf32>
    %18 = vector.broadcast %17 : vector<1x1xf32> to vector<1x128xf32>
    %19 = arith.addf %16, %18 : vector<1x128xf32>
    %20 = math.tanh %19 : vector<1x128xf32>
    %cst_17 = arith.constant 1.000000e+00 : f32
    %21 = vector.broadcast %cst_17 : f32 to vector<1x128xf32>
    %22 = arith.mulf %21, %20 : vector<1x128xf32>
    %c0_18 = arith.constant 0 : index
    %c0_19 = arith.constant 0 : index
    %23 = vector.load %arg8[%c0_18, %c0_19] : memref<1x128xf32, #tpu.memory_space<vmem>>, vector<1x128xf32>
    tpu.vector_store %arg8[%c0_18, %c0_19], %22 {strides = array<i32>} : memref<1x128xf32, #tpu.memory_space<vmem>>, vector<1x128xf32>,
    return
  }
  func.func @transform_0(%arg0: i32) -> (i32, i32) {
    %c0_i32 = arith.constant 0 : i32
    %c0_i32_0 = arith.constant 0 : i32
    return %arg0, %c0_i32 : i32, i32
  }
  func.func @transform_1(%arg0: i32) -> (i32, i32) {
    %c0_i32 = arith.constant 0 : i32
    %c0_i32_0 = arith.constant 0 : i32
    %c0_i32_1 = arith.constant 0 : i32
    return %c0_i32, %c0_i32_0 : i32, i32
  }
  func.func @transform_2(%arg0: i32) -> (i32, i32) {
    %c0_i32 = arith.constant 0 : i32
    %c0_i32_0 = arith.constant 0 : i32
    %c0_i32_1 = arith.constant 0 : i32
    return %c0_i32, %c0_i32_0 : i32, i32
  }
  func.func @transform_3(%arg0: i32) -> (i32, i32) {
    %c0_i32 = arith.constant 0 : i32
    %c0_i32_0 = arith.constant 0 : i32
    %c0_i32_1 = arith.constant 0 : i32
    return %c0_i32, %c0_i32_0 : i32, i32
  }
  func.func @transform_4(%arg0: i32) -> (i32, i32) {
    %c0_i32 = arith.constant 0 : i32
    %c0_i32_0 = arith.constant 0 : i32
    %c0_i32_1 = arith.constant 0 : i32
    return %c0_i32, %c0_i32_0 : i32, i32
  }
  func.func @transform_5(%arg0: i32) -> (i32, i32) {
    %c0_i32 = arith.constant 0 : i32
    %c0_i32_0 = arith.constant 0 : i32
    %c0_i32_1 = arith.constant 0 : i32
    return %c0_i32, %c0_i32_0 : i32, i32
  }
  func.func @transform_6(%arg0: i32) -> (i32, i32) {
    %c0_i32 = arith.constant 0 : i32
    %c0_i32_0 = arith.constant 0 : i32
    %c0_i32_1 = arith.constant 0 : i32
    return %c0_i32, %c0_i32_0 : i32, i32
  }
  func.func @transform_7(%arg0: i32) -> (i32, i32) {
    %c0_i32 = arith.constant 0 : i32
    %c0_i32_0 = arith.constant 0 : i32
    return %arg0, %c0_i32 : i32, i32
  }
}

</mosaic_0001>

<llo_original>
// kernel: tpu_custom_call.1
$region0: #{tpu_custom_call.1}
  #allocation0 [shape = 'u32[]', space=smem, size = 0x4, offset = 0x4, fixed_abs, tag = 'smem constant byte address 0x4 - core index']
  #allocation1 [shape = 'u32[72,128]{1,0:T(1,128)}', space=vmem, size = 0x9000, scoped, tag = 'internal scratch']
  #allocation2 [shape = 'f32[1,1]{1,0:T(1,128)S(1)}', space=vmem, size = 0x200, scoped, tag = 'scoped memory for tpu_custom_call.1']
  %s0 = inlined_call_operand.hbm [shape: f32[8,16], index: 0, kind: input, shape index: {}]
  %s1 = inlined_call_operand.hbm [shape: f32[16,32], index: 1, kind: input, shape index: {}]
  %s2 = inlined_call_operand.vmem [shape: f32[1,32], index: 2, kind: input, shape index: {}]
  %s3 = inlined_call_operand.hbm [shape: f32[32,32], index: 3, kind: input, shape index: {}]
  %s4 = inlined_call_operand.vmem [shape: f32[1,32], index: 4, kind: input, shape index: {}]
  %s5 = inlined_call_operand.vmem [shape: f32[1,32], index: 5, kind: input, shape index: {}]
  %s6 = inlined_call_operand.<no memory space> [shape: f32[1,1], index: 6, kind: input, shape index: {}]
  %s7 = inlined_call_operand.hbm [shape: f32[1,128], index: 7, kind: output, shape index: {}]
  %s8 = sld [smem:[#allocation0]]
  $region50: #{tpu_custom_call.1} parent=0
    _
  %s10 = ssub.s32 1, %s8
  %s11 = scalar_select 0, %s10, %s8
  %v12 = vstv %s6
  %13 = vst [vmem:[#allocation2] sm:$0x1] %v12
  $region1: #{tpu_custom_call.1} parent=0
    #allocation3 [shape = 'u8[65536]{0}', space=vmem, size = 0x10000, scoped, tag = 'input window, operand 0, single buffered']
    #allocation4 [shape = 's32[1]{0}', space=sflag, size = 0x4, scoped, tag = 'scoped memory for tpu_custom_call.1']
    #allocation5 [shape = 's32[1]{0}', space=sflag, size = 0x4, scoped, tag = 'scoped memory for tpu_custom_call.1']
    #allocation6 [shape = 'u8[8192]{0}', space=vmem, size = 0x2000, scoped, tag = 'input window, operand 1, single buffered']
    #allocation7 [shape = 's32[1]{0}', space=sflag, size = 0x4, scoped, tag = 'scoped memory for tpu_custom_call.1']
    #allocation8 [shape = 'u8[16384]{0}', space=vmem, size = 0x4000, scoped, tag = 'input window, operand 3, single buffered']
    #allocation9 [shape = 'u8[512]{0}', space=vmem, size = 0x400, scoped, tag = 'output window, operand 0, single buffered']
    %14 = vsyncpa [#allocation4], 0
    %15 = vsyncpa [#allocation7], 0
    %16 = vsyncpa [#allocation5], 0
    // Predicated region
    $region2: #{tpu_custom_call.1} parent=1 // pred_check
      _
    $region3: #{tpu_custom_call.1} parent=1 // pred_check_branch
      %18 = sbr.rel (0) target = $region5
    $region4: #{tpu_custom_call.1} parent=1 // pred_region
      %20 = vsyncadd [#allocation4], 1920
      %s21 = sshll.u32 %s0, 4
      %s22 = int_to_ptr.hbm [resolvable:$true] %s21
      %s23 = sshll.u32 [#allocation3], 4
      %s24 = int_to_ptr.vmem [resolvable:$true] %s23
      %29 = dma.hbm_to_vmem [thread:$0]  %s22, 128, %s24, [#allocation4], 128, 128, 8
    $region5: #{tpu_custom_call.1} parent=1 // pred_fallthru
      _
    // Predicated region
    $region6: #{tpu_custom_call.1} parent=1 // pred_check
      _
    $region7: #{tpu_custom_call.1} parent=1 // pred_check_branch
      %31 = sbr.rel (0) target = $region9
    $region8: #{tpu_custom_call.1} parent=1 // pred_region
      %33 = vsyncadd [#allocation7], 0
      %s34 = sshll.u32 %s1, 4
      %s35 = int_to_ptr.hbm [resolvable:$true] %s34
      %s36 = sshll.u32 [#allocation6], 4
      %s37 = int_to_ptr.vmem [resolvable:$true] %s36
      %42 = dma.hbm_to_vmem [thread:$0]  %s35, 256, %s37, [#allocation7], 128, 128, 8
    $region9: #{tpu_custom_call.1} parent=1 // pred_fallthru
      _
    // Predicated region
    $region10: #{tpu_custom_call.1} parent=1 // pred_check
      _
    $region11: #{tpu_custom_call.1} parent=1 // pred_check_branch
      %44 = sbr.rel (0) target = $region13
    $region12: #{tpu_custom_call.1} parent=1 // pred_region
      _
    $region13: #{tpu_custom_call.1} parent=1 // pred_fallthru
      _
    // Predicated region
    $region14: #{tpu_custom_call.1} parent=1 // pred_check
      _
    $region15: #{tpu_custom_call.1} parent=1 // pred_check_branch
      %46 = sbr.rel (0) target = $region17
    $region16: #{tpu_custom_call.1} parent=1 // pred_region
      %48 = vsyncadd [#allocation7], 0
      %s49 = sshll.u32 %s3, 4
      %s50 = int_to_ptr.hbm [resolvable:$true] %s49
      %s51 = sshll.u32 [#allocation8], 4
      %s52 = int_to_ptr.vmem [resolvable:$true] %s51
      %57 = dma.hbm_to_vmem [thread:$0]  %s50, 512, %s52, [#allocation7], 128, 128, 8
    $region17: #{tpu_custom_call.1} parent=1 // pred_fallthru
      _
    // Predicated region
    $region18: #{tpu_custom_call.1} parent=1 // pred_check
      _
    $region19: #{tpu_custom_call.1} parent=1 // pred_check_branch
      %59 = sbr.rel (0) target = $region21
    $region20: #{tpu_custom_call.1} parent=1 // pred_region
      _
    $region21: #{tpu_custom_call.1} parent=1 // pred_fallthru
      _
    // Predicated region
    $region22: #{tpu_custom_call.1} parent=1 // pred_check
      _
    $region23: #{tpu_custom_call.1} parent=1 // pred_check_branch
      %61 = sbr.rel (0) target = $region25
    $region24: #{tpu_custom_call.1} parent=1 // pred_region
      _
    $region25: #{tpu_custom_call.1} parent=1 // pred_fallthru
      _
    // Predicated region
    $region26: #{tpu_custom_call.1} parent=1 // pred_check
      _
    $region27: #{tpu_custom_call.1} parent=1 // pred_check_branch
      %63 = sbr.rel (0) target = $region29
    $region28: #{tpu_custom_call.1} parent=1 // pred_region
      _
    $region29: #{tpu_custom_call.1} parent=1 // pred_fallthru
      _
    // Predicated region
    $region30: #{tpu_custom_call.1} parent=1 // pred_check
      _
    $region31: #{tpu_custom_call.1} parent=1 // pred_check_branch
      %65 = sbr.rel (0) target = $region33
    $region32: #{tpu_custom_call.1} parent=1 // pred_region
      %67 = dma.done [#allocation4], 2048
    $region33: #{tpu_custom_call.1} parent=1 // pred_fallthru
      _
    // Predicated region
    $region34: #{tpu_custom_call.1} parent=1 // pred_check
      _
    $region35: #{tpu_custom_call.1} parent=1 // pred_check_branch
      %69 = sbr.rel (0) target = $region37
    $region36: #{tpu_custom_call.1} parent=1 // pred_region
      %71 = dma.done [#allocation7], 256
    $region37: #{tpu_custom_call.1} parent=1 // pred_fallthru
      _
    // Predicated region
    $region38: #{tpu_custom_call.1} parent=1 // pred_check
      _
    $region39: #{tpu_custom_call.1} parent=1 // pred_check_branch
      %73 = sbr.rel (0) target = $region41
    $region40: #{tpu_custom_call.1} parent=1 // pred_region
      %75 = dma.done [#allocation7], 512
    $region41: #{tpu_custom_call.1} parent=1 // pred_fallthru
      _
    %v76 = vld [vmem:[#allocation3] sm:$0xff]
    %v77 = vld [vmem:[#allocation3 + $0x8] sm:$0xff]
    %v78 = vld [vmem:[#allocation3 + $0x10] sm:$0xff]
    %v79 = vld [vmem:[#allocation3 + $0x18] sm:$0xff]
    %v80 = vld [vmem:[#allocation3 + $0x20] sm:$0xff]
    %v81 = vld [vmem:[#allocation3 + $0x28] sm:$0xff]
    %v82 = vld [vmem:[#allocation3 + $0x30] sm:$0xff]
    %v83 = vld [vmem:[#allocation3 + $0x38] sm:$0xff]
    %v84 = vld [vmem:[#allocation3 + $0x40] sm:$0xff]
    %v85 = vld [vmem:[#allocation3 + $0x48] sm:$0xff]
    %v86 = vld [vmem:[#allocation3 + $0x50] sm:$0xff]
    %v87 = vld [vmem:[#allocation3 + $0x58] sm:$0xff]
    %v88 = vld [vmem:[#allocation3 + $0x60] sm:$0xff]
    %v89 = vld [vmem:[#allocation3 + $0x68] sm:$0xff]
    %v90 = vld [vmem:[#allocation3 + $0x70] sm:$0xff]
    %v91 = vld [vmem:[#allocation3 + $0x78] sm:$0xff]
    %v92 = vld [vmem:[#allocation6] sm:$0xff]
    %v93 = vld [vmem:[#allocation6 + $0x8] sm:$0xff]
    %v94 = vld [vmem:[%s2] sm:$0x1]
    %v96 = vperm.slane %v94, 0
    %vm98 = vcmask 130048
    %v100 = vsel %vm98, %v76, 0
    %v103 = vsel %vm98, %v77, 0
    %v106 = vsel %vm98, %v78, 0
    %v109 = vsel %vm98, %v79, 0
    %v112 = vsel %vm98, %v80, 0
    %v115 = vsel %vm98, %v81, 0
    %v118 = vsel %vm98, %v82, 0
    %v121 = vsel %vm98, %v83, 0
    %v124 = vsel %vm98, %v84, 0
    %v127 = vsel %vm98, %v85, 0
    %v130 = vsel %vm98, %v86, 0
    %v133 = vsel %vm98, %v87, 0
    %v136 = vsel %vm98, %v88, 0
    %v139 = vsel %vm98, %v89, 0
    %v142 = vsel %vm98, %v90, 0
    %v145 = vsel %vm98, %v91, 0
    %147 = vmatpush.msra.mxu0 0.0
    %148 = vmatpush.msra.mxu0 0.0
    %149 = vmatpush.msra.mxu0 0.0
    %150 = vmatpush.msra.mxu0 0.0
    %151 = vmatpush.msra.mxu0 0.0
    %152 = vmatpush.msra.mxu0 0.0
    %153 = vmatpush.msra.mxu0 0.0
    %154 = vmatpush.msra.mxu0 0.0
    %155 = vmatpush.msra.mxu0 0.0
    %156 = vmatpush.msra.mxu0 0.0
    %157 = vmatpush.msra.mxu0 0.0
    %158 = vmatpush.msra.mxu0 0.0
    %159 = vmatpush.msra.mxu0 0.0
    %160 = vmatpush.msra.mxu0 0.0
    %161 = vmatpush.msra.mxu0 %v93
    %162 = vmatpush.msra.mxu0 %v92
    %163 = vmatmul.f32.gmra.mxu0 %v100
    %v164 = vpop.f32.mrf.mxu0
    %v165 = vadd.f32 %v96, %v164
    %166 = vmatmul.f32.gmra.mxu0 %v103
    %v167 = vpop.f32.mrf.mxu0
    %v168 = vadd.f32 %v96, %v167
    %169 = vmatmul.f32.gmra.mxu0 %v106
    %v170 = vpop.f32.mrf.mxu0
    %v171 = vadd.f32 %v96, %v170
    %172 = vmatmul.f32.gmra.mxu0 %v109
    %v173 = vpop.f32.mrf.mxu0
    %v174 = vadd.f32 %v96, %v173
    %175 = vmatmul.f32.gmra.mxu0 %v112
    %v176 = vpop.f32.mrf.mxu0
    %v177 = vadd.f32 %v96, %v176
    %178 = vmatmul.f32.gmra.mxu0 %v115
    %v179 = vpop.f32.mrf.mxu0
    %v180 = vadd.f32 %v96, %v179
    %181 = vmatmul.f32.gmra.mxu0 %v118
    %v182 = vpop.f32.mrf.mxu0
    %v183 = vadd.f32 %v96, %v182
    %184 = vmatmul.f32.gmra.mxu0 %v121
    %v185 = vpop.f32.mrf.mxu0
    %v186 = vadd.f32 %v96, %v185
    %187 = vmatmul.f32.gmra.mxu0 %v124
    %v188 = vpop.f32.mrf.mxu0
    %v189 = vadd.f32 %v96, %v188
    %190 = vmatmul.f32.gmra.mxu0 %v127
    %v191 = vpop.f32.mrf.mxu0
    %v192 = vadd.f32 %v96, %v191
    %193 = vmatmul.f32.gmra.mxu0 %v130
    %v194 = vpop.f32.mrf.mxu0
    %v195 = vadd.f32 %v96, %v194
    %196 = vmatmul.f32.gmra.mxu0 %v133
    %v197 = vpop.f32.mrf.mxu0
    %v198 = vadd.f32 %v96, %v197
    %199 = vmatmul.f32.gmra.mxu0 %v136
    %v200 = vpop.f32.mrf.mxu0
    %v201 = vadd.f32 %v96, %v200
    %202 = vmatmul.f32.gmra.mxu0 %v139
    %v203 = vpop.f32.mrf.mxu0
    %v204 = vadd.f32 %v96, %v203
    %205 = vmatmul.f32.gmra.mxu0 %v142
    %v206 = vpop.f32.mrf.mxu0
    %v207 = vadd.f32 %v96, %v206
    %208 = vmatmul.f32.gmra.mxu0 %v145
    %v209 = vpop.f32.mrf.mxu0
    %v210 = vadd.f32 %v96, %v209
    %211 = vdwg.mxu0
    %v212 = vmax.f32 %v165, 0.0
    %v213 = vmax.f32 %v168, 0.0
    %v214 = vmax.f32 %v171, 0.0
    %v215 = vmax.f32 %v174, 0.0
    %v216 = vmax.f32 %v177, 0.0
    %v217 = vmax.f32 %v180, 0.0
    %v218 = vmax.f32 %v183, 0.0
    %v219 = vmax.f32 %v186, 0.0
    %v220 = vmax.f32 %v189, 0.0
    %v221 = vmax.f32 %v192, 0.0
    %v222 = vmax.f32 %v195, 0.0
    %v223 = vmax.f32 %v198, 0.0
    %v224 = vmax.f32 %v201, 0.0
    %v225 = vmax.f32 %v204, 0.0
    %v226 = vmax.f32 %v207, 0.0
    %v227 = vmax.f32 %v210, 0.0
    %v228 = vld [vmem:[#allocation8] sm:$0xff]
    %v229 = vld [vmem:[#allocation8 + $0x8] sm:$0xff]
    %v230 = vld [vmem:[#allocation8 + $0x10] sm:$0xff]
    %v231 = vld [vmem:[#allocation8 + $0x18] sm:$0xff]
    %v232 = vld [vmem:[%s4] sm:$0x1]
    %v234 = vperm.slane %v232, 0
    %vm236 = vcmask 261120
    %v238 = vsel %vm236, %v212, 0
    %v241 = vsel %vm236, %v213, 0
    %v244 = vsel %vm236, %v214, 0
    %v247 = vsel %vm236, %v215, 0
    %v250 = vsel %vm236, %v216, 0
    %v253 = vsel %vm236, %v217, 0
    %v256 = vsel %vm236, %v218, 0
    %v259 = vsel %vm236, %v219, 0
    %v262 = vsel %vm236, %v220, 0
    %v265 = vsel %vm236, %v221, 0
    %v268 = vsel %vm236, %v222, 0
    %v271 = vsel %vm236, %v223, 0
    %v274 = vsel %vm236, %v224, 0
    %v277 = vsel %vm236, %v225, 0
    %v280 = vsel %vm236, %v226, 0
    %v283 = vsel %vm236, %v227, 0
    %285 = vmatpush.msra.mxu0 0.0
    %286 = vmatpush.msra.mxu0 0.0
    %287 = vmatpush.msra.mxu0 0.0
    %288 = vmatpush.msra.mxu0 0.0
    %289 = vmatpush.msra.mxu0 0.0
    %290 = vmatpush.msra.mxu0 0.0
    %291 = vmatpush.msra.mxu0 0.0
    %292 = vmatpush.msra.mxu0 0.0
    %293 = vmatpush.msra.mxu0 0.0
    %294 = vmatpush.msra.mxu0 0.0
    %295 = vmatpush.msra.mxu0 0.0
    %296 = vmatpush.msra.mxu0 0.0
    %297 = vmatpush.msra.mxu0 %v231
    %298 = vmatpush.msra.mxu0 %v230
    %299 = vmatpush.msra.mxu0 %v229
    %300 = vmatpush.msra.mxu0 %v228
    %301 = vmatmul.f32.gmra.mxu0 %v238
    %v302 = vpop.f32.mrf.mxu0
    %v303 = vadd.f32 %v234, %v302
    %304 = vmatmul.f32.gmra.mxu0 %v241
    %v305 = vpop.f32.mrf.mxu0
    %v306 = vadd.f32 %v234, %v305
    %307 = vmatmul.f32.gmra.mxu0 %v244
    %v308 = vpop.f32.mrf.mxu0
    %v309 = vadd.f32 %v234, %v308
    %310 = vmatmul.f32.gmra.mxu0 %v247
    %v311 = vpop.f32.mrf.mxu0
    %v312 = vadd.f32 %v234, %v311
    %313 = vmatmul.f32.gmra.mxu0 %v250
    %v314 = vpop.f32.mrf.mxu0
    %v315 = vadd.f32 %v234, %v314
    %316 = vmatmul.f32.gmra.mxu0 %v253
    %v317 = vpop.f32.mrf.mxu0
    %v318 = vadd.f32 %v234, %v317
    %319 = vmatmul.f32.gmra.mxu0 %v256
    %v320 = vpop.f32.mrf.mxu0
    %v321 = vadd.f32 %v234, %v320
    %322 = vmatmul.f32.gmra.mxu0 %v259
    %v323 = vpop.f32.mrf.mxu0
    %v324 = vadd.f32 %v234, %v323
    %325 = vmatmul.f32.gmra.mxu0 %v262
    %v326 = vpop.f32.mrf.mxu0
    %v327 = vadd.f32 %v234, %v326
    %328 = vmatmul.f32.gmra.mxu0 %v265
    %v329 = vpop.f32.mrf.mxu0
    %v330 = vadd.f32 %v234, %v329
    %331 = vmatmul.f32.gmra.mxu0 %v268
    %v332 = vpop.f32.mrf.mxu0
    %v333 = vadd.f32 %v234, %v332
    %334 = vmatmul.f32.gmra.mxu0 %v271
    %v335 = vpop.f32.mrf.mxu0
    %v336 = vadd.f32 %v234, %v335
    %337 = vmatmul.f32.gmra.mxu0 %v274
    %v338 = vpop.f32.mrf.mxu0
    %v339 = vadd.f32 %v234, %v338
    %340 = vmatmul.f32.gmra.mxu0 %v277
    %v341 = vpop.f32.mrf.mxu0
    %v342 = vadd.f32 %v234, %v341
    %343 = vmatmul.f32.gmra.mxu0 %v280
    %v344 = vpop.f32.mrf.mxu0
    %v345 = vadd.f32 %v234, %v344
    %346 = vmatmul.f32.gmra.mxu0 %v283
    %v347 = vpop.f32.mrf.mxu0
    %v348 = vadd.f32 %v234, %v347
    %349 = vdwg.mxu0
    %v350 = vmax.f32 %v303, 0.0
    %v351 = vmax.f32 %v306, 0.0
    %v352 = vmax.f32 %v309, 0.0
    %v353 = vmax.f32 %v312, 0.0
    %v354 = vmax.f32 %v315, 0.0
    %v355 = vmax.f32 %v318, 0.0
    %v356 = vmax.f32 %v321, 0.0
    %v357 = vmax.f32 %v324, 0.0
    %v358 = vmax.f32 %v327, 0.0
    %v359 = vmax.f32 %v330, 0.0
    %v360 = vmax.f32 %v333, 0.0
    %v361 = vmax.f32 %v336, 0.0
    %v362 = vmax.f32 %v339, 0.0
    %v363 = vmax.f32 %v342, 0.0
    %v364 = vmax.f32 %v345, 0.0
    %v365 = vmax.f32 %v348, 0.0
    %v366 = vld [vmem:[%s5] sm:$0x1]
    %v367 = vld [vmem:[#allocation2] sm:$0x1]
    %369 = vset.pattern.permute.xlu0 0
    %370 = vperm.xlu0 %369, %v367
    %v371 = vpop.permute.xlu0 %370
    %v373 = vperm.slane %v371, 0
    %v375 = vsel %vm236, %v366, 0
    %v378 = vsel %vm236, %v350, 0
    %v381 = vsel %vm236, %v351, 0
    %v384 = vsel %vm236, %v352, 0
    %v387 = vsel %vm236, %v353, 0
    %v390 = vsel %vm236, %v354, 0
    %v393 = vsel %vm236, %v355, 0
    %v396 = vsel %vm236, %v356, 0
    %v399 = vsel %vm236, %v357, 0
    %v402 = vsel %vm236, %v358, 0
    %v405 = vsel %vm236, %v359, 0
    %v408 = vsel %vm236, %v360, 0
    %v411 = vsel %vm236, %v361, 0
    %v414 = vsel %vm236, %v362, 0
    %v417 = vsel %vm236, %v363, 0
    %v420 = vsel %vm236, %v364, 0
    %v423 = vsel %vm236, %v365, 0
    %425 = vmatpush.xpose.msra.mxu0 %v423
    %426 = vmatpush.xpose.msra.mxu0 %v420
    %427 = vmatpush.xpose.msra.mxu0 %v417
    %428 = vmatpush.xpose.msra.mxu0 %v414
    %429 = vmatpush.xpose.msra.mxu0 %v411
    %430 = vmatpush.xpose.msra.mxu0 %v408
    %431 = vmatpush.xpose.msra.mxu0 %v405
    %432 = vmatpush.xpose.msra.mxu0 %v402
    %433 = vmatpush.xpose.msra.mxu0 %v399
    %434 = vmatpush.xpose.msra.mxu0 %v396
    %435 = vmatpush.xpose.msra.mxu0 %v393
    %436 = vmatpush.xpose.msra.mxu0 %v390
    %437 = vmatpush.xpose.msra.mxu0 %v387
    %438 = vmatpush.xpose.msra.mxu0 %v384
    %439 = vmatpush.xpose.msra.mxu0 %v381
    %440 = vmatpush.xpose.msra.mxu0 %v378
    %441 = vmatmul.f32.gmra.mxu0 %v375
    %v442 = vpop.f32.mrf.mxu0
    %v443 = vadd.f32 %v373, %v442
    %444 = vdwg.mxu0
    %v445 = vtanh.pop %v443
    %446 = vst [vmem:[#allocation9] sm:$0x1] %v445
    // Predicated region
    $region42: #{tpu_custom_call.1} parent=1 // pred_check
      _
    $region43: #{tpu_custom_call.1} parent=1 // pred_check_branch
      %448 = sbr.rel (0) target = $region45
    $region44: #{tpu_custom_call.1} parent=1 // pred_region
      %450 = vsyncadd [#allocation5], 0
      %s452 = sshll.u32 [#allocation9], 4
      %s453 = int_to_ptr.vmem [resolvable:$true] %s452
      %s454 = sshll.u32 %s7, 4
      %s455 = int_to_ptr.hbm [resolvable:$true] %s454
      %457 = dma.vmem_to_hbm [thread:$0]  %s453, 16, %s455, [#allocation5]
    $region45: #{tpu_custom_call.1} parent=1 // pred_fallthru
      _
    // Predicated region
    $region46: #{tpu_custom_call.1} parent=1 // pred_check
      _
    $region47: #{tpu_custom_call.1} parent=1 // pred_check_branch
      %459 = sbr.rel (0) target = $region49
    $region48: #{tpu_custom_call.1} parent=1 // pred_region
      %461 = dma.done [#allocation5], 16
    $region49: #{tpu_custom_call.1} parent=1 // pred_fallthru
      _
    %462 = vsyncpa [#allocation4], 1
    %463 = vsyncpa [#allocation7], 1
    %464 = vsyncpa [#allocation5], 1

</llo_original>
